<compile_context>
chip_gen: v7x
topology: tpu7x:2x2x1
jax: 0.10.0
libtpu: 0.0.40
codegen_flags: <defaults>
</compile_context>

<pallas_src>
import functools

import jax
import jax.numpy as jnp
from jax.experimental import pallas as pl
from jax.experimental.pallas import tpu as pltpu

LANE = 128      # vreg lane width
SUBLANE = 8     # f32 sublane group


def _round_up(n, m):
    return ((n + m - 1) // m) * m


# ----------------------------------------------------------------------------
# Kernel: grid = (batch_tiles, n_rest_layers).
#   l == 0      : h = x @ W0 + b0            (x/W0 blocks stay resident over l)
#   every l     : h = act(h) @ Wr[l] + br[l] (Wr[l] streamed per grid step)
#   l == last   : o = h
# ----------------------------------------------------------------------------
def _mlp_kernel(x_ref, w0_ref, b0_ref, wr_ref, br_ref, o_ref, h_ref, *, activation):
    def act(v):
        if activation == "relu":
            return jnp.maximum(v, 0.0)
        elif activation == "silu":
            # EUP sigmoid on the f32 accumulator (v5e-safe: no bf16 EUP path).
            return v * jax.nn.sigmoid(v)
        raise NotImplementedError(activation)

    l = pl.program_id(1)

    @pl.when(l == 0)
    def _():
        # First Linear: [TB, INp](bf16) @ [INp, F](bf16) -> f32 accumulator.
        h_ref[...] = (
            jnp.dot(x_ref[...], w0_ref[...], preferred_element_type=jnp.float32)
            + b0_ref[...]
        )

    # Rest layer l: activation (f32) -> bf16 cast -> MXU matmul -> f32 bias add.
    h = act(h_ref[...])
    h = (
        jnp.dot(h.astype(wr_ref.dtype), wr_ref[0], preferred_element_type=jnp.float32)
        + br_ref[0]
    )
    h_ref[...] = h

    @pl.when(l == pl.num_programs(1) - 1)
    def _():
        # Lane-dense [TB, F] store (F multiple of 128 -> unmasked vst).
        o_ref[...] = h.astype(o_ref.dtype)


# ----------------------------------------------------------------------------
# Parameter init (PyTorch-style) and one-time preparation for the kernel.
# ----------------------------------------------------------------------------
def init_mlp_params(key, input_dim, output_dim, hidden_dim, num_hidden):
    """Deterministic PyTorch-style (uniform +-1/sqrt(fan_in)) Linear init."""
    dims = [(input_dim, hidden_dim)]
    for _ in range(num_hidden):
        dims.append((hidden_dim, hidden_dim))
    dims.append((hidden_dim, output_dim))

    params = []
    for (fan_in, fan_out) in dims:
        key, kw, kb = jax.random.split(key, 3)
        bound = 1.0 / jnp.sqrt(fan_in)
        # PyTorch Linear weight shape: [out, in]
        w = jax.random.uniform(kw, (fan_out, fan_in), jnp.float32, -bound, bound)
        b = jax.random.uniform(kb, (fan_out,), jnp.float32, -bound, bound)
        params.append((w, b))
    return params


def prepare_mlp_params(params, weight_dtype=jnp.bfloat16):
    """One-time prep (NOT per forward):
       * transpose weights [out,in] -> [in,out],
       * zero-pad all feature dims to a 128-lane multiple F (and IN -> INp),
       * cast weights to bf16 (biases stay f32 for the f32 accumulator path).
    Returns (w0 [INp,F], b0 [1,F], w_rest [L-1,F,F], b_rest [L-1,1,F],
             out_dim, F, INp).
    """
    feat_dims = [w.shape[0] for w, _ in params]          # out-features per layer
    F = _round_up(max(feat_dims), LANE)
    in_dim = params[0][0].shape[1]
    INp = _round_up(in_dim, LANE)                        # lane-dense LHS

    w0, b0 = params[0]
    out0, _ = w0.shape
    w0_t = (jnp.zeros((INp, F), jnp.float32)
            .at[:in_dim, :out0].set(w0.T).astype(weight_dtype))
    b0_p = jnp.zeros((1, F), jnp.float32).at[0, :out0].set(b0)

    wr_list, br_list = [], []
    for w, b in params[1:]:
        o, i = w.shape
        wr_list.append(jnp.zeros((F, F), jnp.float32)
                       .at[:i, :o].set(w.T).astype(weight_dtype))
        br_list.append(jnp.zeros((1, F), jnp.float32).at[0, :o].set(b))
    w_rest = jnp.stack(wr_list)       # [L-1, F, F]  (bf16)
    b_rest = jnp.stack(br_list)       # [L-1, 1, F]  (f32)

    out_dim = params[-1][0].shape[0]
    return w0_t, b0_p, w_rest, b_rest, out_dim, F, INp


# ----------------------------------------------------------------------------
# Forward: single pallas_call; batch tiles x streamed layers.
# ----------------------------------------------------------------------------
def mlp_forward(x, prepared, activation):
    # Zero-preservation invariant of the lane padding needs act(0) == 0.
    assert activation in ("relu", "silu"), "padding invariant requires act(0)==0"

    w0, b0, wr, br, out_dim, F, INp = prepared
    B, IN = x.shape
    assert INp >= IN
    wdt = w0.dtype

    # Batch tile: full sublane groups, capped so the h tile stays modest.
    TB = min(_round_up(B, SUBLANE), 256)
    Bp = _round_up(B, TB)

    # Lane-dense, bf16 LHS slab [Bp, INp]; padded rows/cols are zero.
    x_p = jnp.zeros((Bp, INp), wdt).at[:B, :IN].set(x.astype(wdt))

    n_rest = wr.shape[0]
    grid = (Bp // TB, n_rest)

    # Explicit VMEM budget (double-buffered inputs/output + f32 h scratch),
    # capped for v7x's smaller physical VMEM.
    itemsize_w = jnp.dtype(wdt).itemsize
    vmem_need = (
        2 * TB * INp * itemsize_w        # x block buffers
        + 2 * INp * F * itemsize_w       # w0 block buffers
        + 2 * F * 4                      # b0
        + 2 * F * F * itemsize_w         # streamed layer weight (double-buffered)
        + 2 * F * 4                      # streamed layer bias
        + TB * F * 4                     # h scratch (f32)
        + 2 * TB * F * 4                 # output block buffers
    )
    vmem_limit = int(min(48 * 2**20, max(32 * 2**20, 2 * vmem_need)))

    kernel = functools.partial(_mlp_kernel, activation=activation)

    # TODO(synk): for very large hidden_dim (F >> 1024) additionally tile the
    # F (lane) axis of h / Wr so a single layer-weight block fits VMEM.
    out_padded = pl.pallas_call(
        kernel,
        out_shape=jax.ShapeDtypeStruct((Bp, F), jnp.float32),
        grid=grid,
        in_specs=[
            pl.BlockSpec((TB, INp), lambda b, l: (b, 0)),     # x (resident over l)
            pl.BlockSpec((INp, F), lambda b, l: (0, 0)),      # W0 (resident over l)
            pl.BlockSpec((1, F), lambda b, l: (0, 0)),        # b0
            pl.BlockSpec((1, F, F), lambda b, l: (l, 0, 0)),  # Wr[l] streamed
            pl.BlockSpec((1, 1, F), lambda b, l: (l, 0, 0)),  # br[l] streamed
        ],
        out_specs=pl.BlockSpec((TB, F), lambda b, l: (b, 0)),
        scratch_shapes=[pltpu.VMEM((TB, F), jnp.float32)],    # h carry across l
        compiler_params=pltpu.CompilerParams(
            dimension_semantics=("parallel", "arbitrary"),
            vmem_limit_bytes=vmem_limit,
        ),
    )(x_p, w0, b0, wr, br)

    # Slice the real rows/columns back out (padded lanes are exactly zero).
    return out_padded[:B, :out_dim]


# ----------------------------------------------------------------------------
# Pure-JAX references for correctness checking.
# ----------------------------------------------------------------------------
def mlp_reference(x, params, activation, weight_dtype=jnp.float32):
    """weight_dtype=f32: exact module semantics.
       weight_dtype=bf16: mirrors the kernel's dtype handling (bf16 operands,
       f32 accumulation, f32 bias/activation) for a tight comparison."""
    def act(v):
        if activation == "relu":
            return jnp.maximum(v, 0.0)
        elif activation == "silu":
            return v * jax.nn.sigmoid(v)
        raise NotImplementedError(activation)

    h = x.astype(jnp.float32)
    n = len(params)
    for i, (w, b) in enumerate(params):
        wq = w.astype(weight_dtype)
        h = jnp.dot(h.astype(weight_dtype), wq.T,
                    preferred_element_type=jnp.float32) + b
        if i < n - 1:
            h = act(h)
    return h


if __name__ == "__main__":
    # Small, forward-implied shapes.
    batch = 8
    input_dim = 32
    hidden_dim = 32
    output_dim = 16
    num_hidden = 2

    key = jax.random.PRNGKey(0)
    key, kx = jax.random.split(key)
    x = jax.random.normal(kx, (batch, input_dim), jnp.float32)

    params = init_mlp_params(key, input_dim, output_dim, hidden_dim, num_hidden)
    prepared = prepare_mlp_params(params, weight_dtype=jnp.bfloat16)

    ok = True
    for activation in ("silu", "relu"):
        out = jax.block_until_ready(mlp_forward(x, prepared, activation))
        assert out.shape == (batch, output_dim)

        # Tight check vs a reference with identical bf16/f32 dtype handling.
        ref_bf16 = mlp_reference(x, params, activation, weight_dtype=jnp.bfloat16)
        ok &= bool(jnp.allclose(out, ref_bf16, atol=1e-4, rtol=1e-4))

        # Loose semantic check vs the exact f32 module (bf16 weight quant noise).
        ref_f32 = mlp_reference(x, params, activation, weight_dtype=jnp.float32)
        ok &= bool(jnp.allclose(out, ref_f32, atol=5e-2, rtol=5e-2))

    assert ok, "mismatch vs reference"
    print("KERNEL_OK")
</pallas_src>

<mosaic_0001>
module attributes {stable_mosaic.version = 11 : i64} {
  func.func @_mlp_kernel(%arg0: i32, %arg1: i32, %arg2: memref<8x128xbf16, #tpu.memory_space<vmem>>, %arg3: memref<128x128xbf16, #tpu.memory_space<vmem>>, %arg4: memref<1x128xf32, #tpu.memory_space<vmem>>, %arg5: memref<1x128x128xbf16, #tpu.memory_space<vmem>>, %arg6: memref<1x1x128xf32, #tpu.memory_space<vmem>>, %arg7: memref<8x128xf32, #tpu.memory_space<vmem>>, %arg8: memref<8x128xf32, #tpu.memory_space<vmem>>) attributes {dimension_semantics = [#tpu.dimension_semantics<parallel>, #tpu.dimension_semantics<arbitrary>], iteration_bounds = array<i64: 1, 3>, scalar_prefetch = 0 : i64, scratch_operands = 1 : i64, tpu.core_type = #tpu.core_type<tc>, window_params = [{transform_indices = @transform_0, window_bounds = array<i64: 8, 128>}, {pipeline_mode = #tpu.pipeline_mode<synchronous>, transform_indices = @transform_1, window_bounds = array<i64: 128, 128>}, {pipeline_mode = #tpu.pipeline_mode<synchronous>, transform_indices = @transform_2, window_bounds = array<i64: 1, 128>}, {transform_indices = @transform_3, window_bounds = array<i64: 1, 128, 128>}, {transform_indices = @transform_4, window_bounds = array<i64: 1, 1, 128>}, {transform_indices = @transform_5, window_bounds = array<i64: 8, 128>}]} {
    %c0_i32 = arith.constant 0 : i32
    %0 = arith.cmpi eq, %arg1, %c0_i32 : i32
    %1 = arith.extui %0 : i1 to i32
    %c0_i32_0 = arith.constant 0 : i32
    %2 = arith.cmpi ne, %1, %c0_i32_0 : i32
    scf.if %2 {
      %c0_12 = arith.constant 0 : index
      %c0_13 = arith.constant 0 : index
      %22 = vector.load %arg2[%c0_12, %c0_13] : memref<8x128xbf16, #tpu.memory_space<vmem>>, vector<8x128xbf16>
      %c0_14 = arith.constant 0 : index
      %c0_15 = arith.constant 0 : index
      %23 = vector.load %arg3[%c0_14, %c0_15] : memref<128x128xbf16, #tpu.memory_space<vmem>>, vector<128x128xbf16>
      %cst_16 = arith.constant dense<0.000000e+00> : vector<8x128xf32>
      %24 = tpu.matmul %22, %23, %cst_16 {dimension_numbers = #tpu.dot_dimension_numbers<[1], [0], [0], [1], [0, 0, 1, 1], [], []>} : vector<8x128xbf16>, vector<128x128xbf16>, vector<8x128xf32> -> vector<8x128xf32>
      %c0_17 = arith.constant 0 : index
      %c0_18 = arith.constant 0 : index
      %25 = vector.load %arg4[%c0_17, %c0_18] : memref<1x128xf32, #tpu.memory_space<vmem>>, vector<1x128xf32>
      %26 = vector.broadcast %25 : vector<1x128xf32> to vector<8x128xf32>
      %27 = arith.addf %24, %26 : vector<8x128xf32>
      %c0_19 = arith.constant 0 : index
      %c0_20 = arith.constant 0 : index
      %28 = vector.load %arg8[%c0_19, %c0_20] : memref<8x128xf32, #tpu.memory_space<vmem>>, vector<8x128xf32>
      tpu.vector_store %arg8[%c0_19, %c0_20], %27 {strides = array<i32>} : memref<8x128xf32, #tpu.memory_space<vmem>>, vector<8x128xf32>,
    } else {
    }
    %c0 = arith.constant 0 : index
    %c0_1 = arith.constant 0 : index
    %3 = vector.load %arg8[%c0, %c0_1] : memref<8x128xf32, #tpu.memory_space<vmem>>, vector<8x128xf32>
    %4 = arith.negf %3 : vector<8x128xf32>
    %5 = math.exp %4 : vector<8x128xf32>
    %cst = arith.constant 1.000000e+00 : f32
    %6 = vector.broadcast %cst : f32 to vector<8x128xf32>
    %7 = arith.addf %6, %5 : vector<8x128xf32>
    %8 = arith.divf %6, %7 : vector<8x128xf32>
    %9 = arith.mulf %3, %8 : vector<8x128xf32>
    %10 = arith.truncf %9 : vector<8x128xf32> to vector<8x128xbf16>
    %c0_2 = arith.constant 0 : index
    %c0_3 = arith.constant 0 : index
    %c0_4 = arith.constant 0 : index
    %11 = vector.load %arg5[%c0_2, %c0_3, %c0_4] : memref<1x128x128xbf16, #tpu.memory_space<vmem>>, vector<1x128x128xbf16>
    %12 = vector.shape_cast %11 : vector<1x128x128xbf16> to vector<128x128xbf16>
    %cst_5 = arith.constant dense<0.000000e+00> : vector<8x128xf32>
    %13 = tpu.matmul %10, %12, %cst_5 {dimension_numbers = #tpu.dot_dimension_numbers<[1], [0], [0], [1], [0, 0, 1, 1], [], []>} : vector<8x128xbf16>, vector<128x128xbf16>, vector<8x128xf32> -> vector<8x128xf32>
    %c0_6 = arith.constant 0 : index
    %c0_7 = arith.constant 0 : index
    %c0_8 = arith.constant 0 : index
    %14 = vector.load %arg6[%c0_6, %c0_7, %c0_8] : memref<1x1x128xf32, #tpu.memory_space<vmem>>, vector<1x1x128xf32>
    %15 = vector.shape_cast %14 : vector<1x1x128xf32> to vector<1x128xf32>
    %16 = vector.broadcast %15 : vector<1x128xf32> to vector<8x128xf32>
    %17 = arith.addf %13, %16 : vector<8x128xf32>
    %c0_9 = arith.constant 0 : index
    %c0_10 = arith.constant 0 : index
    %18 = vector.load %arg8[%c0_9, %c0_10] : memref<8x128xf32, #tpu.memory_space<vmem>>, vector<8x128xf32>
    tpu.vector_store %arg8[%c0_9, %c0_10], %17 {strides = array<i32>} : memref<8x128xf32, #tpu.memory_space<vmem>>, vector<8x128xf32>,
    %c2_i32 = arith.constant 2 : i32
    %19 = arith.cmpi eq, %arg1, %c2_i32 : i32
    %20 = arith.extui %19 : i1 to i32
    %c0_i32_11 = arith.constant 0 : i32
    %21 = arith.cmpi ne, %20, %c0_i32_11 : i32
    scf.if %21 {
      %c0_12 = arith.constant 0 : index
      %c0_13 = arith.constant 0 : index
      %22 = vector.load %arg7[%c0_12, %c0_13] : memref<8x128xf32, #tpu.memory_space<vmem>>, vector<8x128xf32>
      tpu.vector_store %arg7[%c0_12, %c0_13], %17 {strides = array<i32>} : memref<8x128xf32, #tpu.memory_space<vmem>>, vector<8x128xf32>,
    } else {
    }
    return
  }
  func.func @transform_0(%arg0: i32, %arg1: i32) -> (i32, i32) {
    %c0_i32 = arith.constant 0 : i32
    %c0_i32_0 = arith.constant 0 : i32
    return %arg0, %c0_i32 : i32, i32
  }
  func.func @transform_1(%arg0: i32, %arg1: i32) -> (i32, i32) {
    %c0_i32 = arith.constant 0 : i32
    %c0_i32_0 = arith.constant 0 : i32
    %c0_i32_1 = arith.constant 0 : i32
    return %c0_i32, %c0_i32_0 : i32, i32
  }
  func.func @transform_2(%arg0: i32, %arg1: i32) -> (i32, i32) {
    %c0_i32 = arith.constant 0 : i32
    %c0_i32_0 = arith.constant 0 : i32
    %c0_i32_1 = arith.constant 0 : i32
    return %c0_i32, %c0_i32_0 : i32, i32
  }
  func.func @transform_3(%arg0: i32, %arg1: i32) -> (i32, i32, i32) {
    %c0_i32 = arith.constant 0 : i32
    %c0_i32_0 = arith.constant 0 : i32
    %c0_i32_1 = arith.constant 0 : i32
    return %arg1, %c0_i32, %c0_i32_0 : i32, i32, i32
  }
  func.func @transform_4(%arg0: i32, %arg1: i32) -> (i32, i32, i32) {
    %c0_i32 = arith.constant 0 : i32
    %c0_i32_0 = arith.constant 0 : i32
    %c0_i32_1 = arith.constant 0 : i32
    return %arg1, %c0_i32, %c0_i32_0 : i32, i32, i32
  }
  func.func @transform_5(%arg0: i32, %arg1: i32) -> (i32, i32) {
    %c0_i32 = arith.constant 0 : i32
    %c0_i32_0 = arith.constant 0 : i32
    return %arg0, %c0_i32 : i32, i32
  }
}

</mosaic_0001>

<llo_original>
// kernel: tpu_custom_call.1
$region0: #{tpu_custom_call.1}
  #allocation0 [shape = 'u32[]', space=smem, size = 0x4, offset = 0x4, fixed_abs, tag = 'smem constant byte address 0x4 - core index']
  #allocation1 [shape = 'u32[144,128]{1,0:T(1,128)}', space=vmem, size = 0x12000, scoped, tag = 'internal scratch']
  #allocation2 [shape = 'f32[8,128]{1,0:T(8,128)}', space=vmem, size = 0x1000, scoped, tag = 'scratch operand']
  %s0 = inlined_call_operand.hbm [shape: bf16[8,128], index: 0, kind: input, shape index: {}]
  %s1 = inlined_call_operand.hbm [shape: bf16[128,128], index: 1, kind: input, shape index: {}]
  %s2 = inlined_call_operand.vmem [shape: f32[1,128], index: 2, kind: input, shape index: {}]
  %s3 = inlined_call_operand.hbm [shape: bf16[3,128,128], index: 3, kind: input, shape index: {}]
  %s4 = inlined_call_operand.vmem [shape: f32[3,1,128], index: 4, kind: input, shape index: {}]
  %s5 = inlined_call_operand.hbm [shape: f32[8,128], index: 5, kind: output, shape index: {}]
  %s6 = sld [smem:[#allocation0]]
  $region73: #{tpu_custom_call.1} parent=0
    _
  %s8 = ssub.s32 1, %s6
  %s9 = scalar_select 0, %s8, %s6
  $region1: #{tpu_custom_call.1} parent=0
    #allocation3 [shape = 'u8[2048]{0}', space=vmem, size = 0x800, scoped, tag = 'input window, operand 0, single buffered']
    #allocation4 [shape = 's32[2]{0}', space=sflag, size = 0x8, scoped, tag = 'scoped memory for tpu_custom_call.1']
    #allocation5 [shape = 's32[2]{0}', space=sflag, size = 0x8, scoped, tag = 'scoped memory for tpu_custom_call.1']
    #allocation6 [shape = 'u8[32768]{0}', space=vmem, size = 0x8000, scoped, tag = 'input window, operand 1, single buffered']
    #allocation7 [shape = 's32[1]{0}', space=sflag, size = 0x4, scoped, tag = 'scoped memory for tpu_custom_call.1']
    #allocation8 [shape = 'u8[65536]{0}', space=vmem, size = 0x10000, scoped, tag = 'input window, operand 3']
    #allocation9 [shape = 'u8[4096]{0}', space=vmem, size = 0x1000, scoped, tag = 'output window, operand 0, single buffered']
    %10 = vsyncpa [#allocation4], 0
    %11 = vsyncpa [#allocation7], 0
    %12 = vsyncpa [#allocation5], 0
    loop: start=0, step=1, limit=5
    $region2: #{tpu_custom_call.1} parent=1 // loop_pre_header
      _
    $region3: #{tpu_custom_call.1} parent=1 // loop_header
      %s14 = sphi 0, %s18
      %p15 = scmp.ge.s32.totalorder %s14, 5
      %s21 = sphi 0, %s33
      %s22 = sphi 0, %s29
      %s23 = sphi 0, %s21
      %s24 = sphi 0, %s22
      %s25 = sphi 0, %s23
      %s26 = sphi 0, %s24
      %s36 = sphi 0, %s38
      %s39 = sphi 0, %s36
      %s40 = sphi 0, %s39
      %s56 = sphi 0, %s40
      %s60 = sphi 0, %s60
      %s62 = sphi 0, %s60
      %s63 = sphi 0, %s62
      %s77 = sphi 0, %s63
      %s81 = sphi 0, %s81
      %s83 = sphi 0, %s81
      %s84 = sphi 0, %s83
      %s98 = sphi 0, %s84
      %s104 = sphi 0, %s106
      %s107 = sphi 0, %s104
      %s108 = sphi 0, %s107
      %s124 = sphi 0, %s108
      %s130 = sphi 0, %s132
      %s133 = sphi 0, %s130
      %s134 = sphi 0, %s133
      %s150 = sphi 0, %s134
      %s156 = sphi 0, %s158
      %s159 = sphi 0, %s156
      %s160 = sphi 0, %s159
      %s176 = sphi 0, %s160
    $region4: #{tpu_custom_call.1} parent=1 // loop_header_branch
      %17 = sbr.rel (%p15) target = $region8
    $region5: #{tpu_custom_call.1} parent=1 // loop_body
      %s19 = ssub.s32 %s14, 1
      %s20 = ssub.s32 %s14, 2
      %s27 = sadd.s32 1, %s22
      %p28 = scmp.ge.s32.totalorder %s27, 3
      %s29 = scalar_select %p28, 0, %s27
      %s30 = sadd.s32 1, %s21
      %s31 = scalar_select %p28, %s30, %s21
      %p32 = scmp.ge.s32.totalorder %s31, 1
      %s33 = scalar_select %p32, 0, %s31
      %s34 = ssub.s32 %s21, %s33
      %p35 = scmp.eq.s32.totalorder %s34, 0
      %s37 = sadd.s32 %s36, 1
      %s38 = scalar_select %p35, %s36, %s37
      %p41 = pneg %p35
      %p42 = scmp.eq.s32.totalorder %s14, 2
      %p43 = por %p41, %p42
      %p44 = scmp.ne.s32.totalorder %s36, %s39
      %p45 = scmp.eq.s32.totalorder %s14, 0
      %p46 = por %p44, %p45
      %p47 = scmp.ne.s32.totalorder %s36, %s39
      %p48 = scmp.eq.s32.totalorder %s19, 2
      %p49 = por %p47, %p48
      %p50 = scmp.ne.s32.totalorder %s39, %s40
      %p51 = scmp.eq.s32.totalorder %s19, 0
      %p52 = por %p50, %p51
      %p53 = scmp.ne.s32.totalorder %s39, %s40
      %p54 = scmp.eq.s32.totalorder %s20, 2
      %p55 = por %p53, %p54
      %p57 = scmp.ne.s32.totalorder %s40, %s56
      %p58 = scmp.eq.s32.totalorder %s20, 0
      %p59 = por %p57, %p58
      %s61 = sadd.s32 %s60, 1
      %p64 = scmp.eq.s32.totalorder %s14, 2
      %p65 = scmp.ne.s32.totalorder %s60, %s62
      %p66 = scmp.eq.s32.totalorder %s14, 0
      %p67 = por %p65, %p66
      %p68 = scmp.ne.s32.totalorder %s60, %s62
      %p69 = scmp.eq.s32.totalorder %s19, 2
      %p70 = por %p68, %p69
      %p71 = scmp.ne.s32.totalorder %s62, %s63
      %p72 = scmp.eq.s32.totalorder %s19, 0
      %p73 = por %p71, %p72
      %p74 = scmp.ne.s32.totalorder %s62, %s63
      %p75 = scmp.eq.s32.totalorder %s20, 2
      %p76 = por %p74, %p75
      %p78 = scmp.ne.s32.totalorder %s63, %s77
      %p79 = scmp.eq.s32.totalorder %s20, 0
      %p80 = por %p78, %p79
      %s82 = sadd.s32 %s81, 1
      %p85 = scmp.eq.s32.totalorder %s14, 2
      %p86 = scmp.ne.s32.totalorder %s81, %s83
      %p87 = scmp.eq.s32.totalorder %s14, 0
      %p88 = por %p86, %p87
      %p89 = scmp.ne.s32.totalorder %s81, %s83
      %p90 = scmp.eq.s32.totalorder %s19, 2
      %p91 = por %p89, %p90
      %p92 = scmp.ne.s32.totalorder %s83, %s84
      %p93 = scmp.eq.s32.totalorder %s19, 0
      %p94 = por %p92, %p93
      %p95 = scmp.ne.s32.totalorder %s83, %s84
      %p96 = scmp.eq.s32.totalorder %s20, 2
      %p97 = por %p95, %p96
      %p99 = scmp.ne.s32.totalorder %s84, %s98
      %p100 = scmp.eq.s32.totalorder %s20, 0
      %p101 = por %p99, %p100
      %s102 = ssub.s32 %s22, %s29
      %p103 = scmp.eq.s32.totalorder %s102, 0
      %s105 = sadd.s32 %s104, 1
      %s106 = scalar_select %p103, %s104, %s105
      %p109 = pneg %p103
      %p110 = scmp.eq.s32.totalorder %s14, 2
      %p111 = por %p109, %p110
      %p112 = scmp.ne.s32.totalorder %s104, %s107
      %p113 = scmp.eq.s32.totalorder %s14, 0
      %p114 = por %p112, %p113
      %p115 = scmp.ne.s32.totalorder %s104, %s107
      %p116 = scmp.eq.s32.totalorder %s19, 2
      %p117 = por %p115, %p116
      %p118 = scmp.ne.s32.totalorder %s107, %s108
      %p119 = scmp.eq.s32.totalorder %s19, 0
      %p120 = por %p118, %p119
      %p121 = scmp.ne.s32.totalorder %s107, %s108
      %p122 = scmp.eq.s32.totalorder %s20, 2
      %p123 = por %p121, %p122
      %p125 = scmp.ne.s32.totalorder %s108, %s124
      %p126 = scmp.eq.s32.totalorder %s20, 0
      %p127 = por %p125, %p126
      %s128 = ssub.s32 %s22, %s29
      %p129 = scmp.eq.s32.totalorder %s128, 0
      %s131 = sadd.s32 %s130, 1
      %s132 = scalar_select %p129, %s130, %s131
      %p135 = pneg %p129
      %p136 = scmp.eq.s32.totalorder %s14, 2
      %p137 = por %p135, %p136
      %p138 = scmp.ne.s32.totalorder %s130, %s133
      %p139 = scmp.eq.s32.totalorder %s14, 0
      %p140 = por %p138, %p139
      %p141 = scmp.ne.s32.totalorder %s130, %s133
      %p142 = scmp.eq.s32.totalorder %s19, 2
      %p143 = por %p141, %p142
      %p144 = scmp.ne.s32.totalorder %s133, %s134
      %p145 = scmp.eq.s32.totalorder %s19, 0
      %p146 = por %p144, %p145
      %p147 = scmp.ne.s32.totalorder %s133, %s134
      %p148 = scmp.eq.s32.totalorder %s20, 2
      %p149 = por %p147, %p148
      %p151 = scmp.ne.s32.totalorder %s134, %s150
      %p152 = scmp.eq.s32.totalorder %s20, 0
      %p153 = por %p151, %p152
      %s154 = ssub.s32 %s21, %s33
      %p155 = scmp.eq.s32.totalorder %s154, 0
      %s157 = sadd.s32 %s156, 1
      %s158 = scalar_select %p155, %s156, %s157
      %p161 = pneg %p155
      %p162 = scmp.eq.s32.totalorder %s14, 2
      %p163 = por %p161, %p162
      %p164 = scmp.ne.s32.totalorder %s156, %s159
      %p165 = scmp.eq.s32.totalorder %s14, 0
      %p166 = por %p164, %p165
      %p167 = scmp.ne.s32.totalorder %s156, %s159
      %p168 = scmp.eq.s32.totalorder %s19, 2
      %p169 = por %p167, %p168
      %p170 = scmp.ne.s32.totalorder %s159, %s160
      %p171 = scmp.eq.s32.totalorder %s19, 0
      %p172 = por %p170, %p171
      %p173 = scmp.ne.s32.totalorder %s159, %s160
      %p174 = scmp.eq.s32.totalorder %s20, 2
      %p175 = por %p173, %p174
      %p177 = scmp.ne.s32.totalorder %s160, %s176
      %p178 = scmp.eq.s32.totalorder %s20, 0
      %p179 = por %p177, %p178
      %p180 = scmp.le.s32.totalorder 1, %s14
      %p181 = scmp.lt.s32.totalorder %s14, 4
      %p182 = pnand %p180, %p181
      %p183 = pneg %p182
      // Predicated region
      $region9: #{tpu_custom_call.1} parent=5 // pred_check
        _
      $region10: #{tpu_custom_call.1} parent=5 // pred_check_branch
        %185 = sbr.rel (%p182) target = $region12
      $region11: #{tpu_custom_call.1} parent=5 // pred_region
        %s186 = ssub.s32 %s14, 1
        // Predicated region
        $region13: #{tpu_custom_call.1} parent=11 // pred_check
          %p187 = pneg %p52
        $region14: #{tpu_custom_call.1} parent=11 // pred_check_branch
          %189 = sbr.rel (%p187) target = $region16
        $region15: #{tpu_custom_call.1} parent=11 // pred_region
          %s191 = ssub.s32 64, 64
          %192 = vsyncadd [#allocation4], %s191
          %s193 = smul.addr %s23, 64
          %s194 = scalar_lea.hbm %s0, %s193
          %s196 = sshll.u32 [#allocation3], 4
          %s197 = int_to_ptr.vmem [resolvable:$true] %s196
          %199 = dma.hbm_to_vmem [thread:$0]  %s194, 64, %s197, [#allocation4]
        $region16: #{tpu_custom_call.1} parent=11 // pred_fallthru
          _
        // Predicated region
        $region17: #{tpu_custom_call.1} parent=11 // pred_check
          %p200 = pneg %p73
        $region18: #{tpu_custom_call.1} parent=11 // pred_check_branch
          %202 = sbr.rel (%p200) target = $region20
        $region19: #{tpu_custom_call.1} parent=11 // pred_region
          %s204 = ssub.s32 1024, 1024
          %205 = vsyncadd [#allocation7], %s204
          %s206 = sshll.u32 [#allocation6], 4
          %s207 = int_to_ptr.vmem [resolvable:$true] %s206
          %212 = dma.hbm_to_vmem [thread:$0]  %s1, 1024, %s207, [#allocation7], 64, 64, 4
        $region20: #{tpu_custom_call.1} parent=11 // pred_fallthru
          _
        // Predicated region
        $region21: #{tpu_custom_call.1} parent=11 // pred_check
          %p213 = pneg %p94
        $region22: #{tpu_custom_call.1} parent=11 // pred_check_branch
          %215 = sbr.rel (%p213) target = $region24
        $region23: #{tpu_custom_call.1} parent=11 // pred_region
          _
        $region24: #{tpu_custom_call.1} parent=11 // pred_fallthru
          _
      $region12: #{tpu_custom_call.1} parent=5 // pred_fallthru
        _
      %p216 = scmp.lt.s32.totalorder %s14, 3
      // Predicated region
      $region25: #{tpu_custom_call.1} parent=5 // pred_check
        %p217 = pneg %p216
      $region26: #{tpu_custom_call.1} parent=5 // pred_check_branch
        %219 = sbr.rel (%p217) target = $region28
      $region27: #{tpu_custom_call.1} parent=5 // pred_region
        // Predicated region
        $region29: #{tpu_custom_call.1} parent=27 // pred_check
          %p220 = pneg %p114
        $region30: #{tpu_custom_call.1} parent=27 // pred_check_branch
          %222 = sbr.rel (%p220) target = $region32
        $region31: #{tpu_custom_call.1} parent=27 // pred_region
          %s223 = sand.u32 %s14, 1
          %s224 = scalar_lea.sflag [#allocation4], %s223
          %s225 = sand.u32 %s104, 1
          %s226 = smul.addr %s225, 64
          %s227 = scalar_lea.vmem [#allocation8], %s226
          %s229 = ssub.s32 1024, 1024
          %230 = vsyncadd %s224, %s229
          %s231 = smul.addr %s22, 16
          %s232 = smul.addr %s231, 64
          %s233 = scalar_lea.hbm %s3, %s232
          %s234 = sshll.u32 %s227, 4
          %s235 = int_to_ptr.vmem [resolvable:$true] %s234
          %240 = dma.hbm_to_vmem [thread:$0]  %s233, 1024, %s235, %s224, 64, 64, 4
        $region32: #{tpu_custom_call.1} parent=27 // pred_fallthru
          _
        // Predicated region
        $region33: #{tpu_custom_call.1} parent=27 // pred_check
          %p241 = pneg %p140
        $region34: #{tpu_custom_call.1} parent=27 // pred_check_branch
          %243 = sbr.rel (%p241) target = $region36
        $region35: #{tpu_custom_call.1} parent=27 // pred_region
          %p244 = scmp.lt.s32.totalorder %s22, 2
          %s245 = scalar_select %p244, %s22, 2
          %s246 = scalar_lea.vmem %s4, %s245
        $region36: #{tpu_custom_call.1} parent=27 // pred_fallthru
          _
      $region28: #{tpu_custom_call.1} parent=5 // pred_fallthru
        _
      %p247 = scmp.le.s32.totalorder 1, %s14
      %p248 = scmp.lt.s32.totalorder %s14, 4
      %p249 = pnand %p247, %p248
      %p250 = pneg %p249
      // Predicated region
      $region37: #{tpu_custom_call.1} parent=5 // pred_check
        _
      $region38: #{tpu_custom_call.1} parent=5 // pred_check_branch
        %252 = sbr.rel (%p249) target = $region40
      $region39: #{tpu_custom_call.1} parent=5 // pred_region
        %s253 = ssub.s32 %s14, 1
        // Predicated region
        $region41: #{tpu_custom_call.1} parent=39 // pred_check
          %p254 = pneg %p52
        $region42: #{tpu_custom_call.1} parent=39 // pred_check_branch
          %256 = sbr.rel (%p254) target = $region44
        $region43: #{tpu_custom_call.1} parent=39 // pred_region
          %257 = dma.done [#allocation4], 64
        $region44: #{tpu_custom_call.1} parent=39 // pred_fallthru
          _
        // Predicated region
        $region45: #{tpu_custom_call.1} parent=39 // pred_check
          %p258 = pneg %p73
        $region46: #{tpu_custom_call.1} parent=39 // pred_check_branch
          %260 = sbr.rel (%p258) target = $region48
        $region47: #{tpu_custom_call.1} parent=39 // pred_region
          %261 = dma.done [#allocation7], 1024
        $region48: #{tpu_custom_call.1} parent=39 // pred_fallthru
          _
        %s262 = sand.u32 %s19, 1
        %s263 = scalar_lea.sflag [#allocation4], %s262
        %s264 = sand.u32 %s107, 1
        %s265 = smul.addr %s264, 64
        %s266 = scalar_lea.vmem [#allocation8], %s265
        // Predicated region
        $region49: #{tpu_custom_call.1} parent=39 // pred_check
          %p267 = pneg %p120
        $region50: #{tpu_custom_call.1} parent=39 // pred_check_branch
          %269 = sbr.rel (%p267) target = $region52
        $region51: #{tpu_custom_call.1} parent=39 // pred_region
          %270 = dma.done %s263, 1024
        $region52: #{tpu_custom_call.1} parent=39 // pred_fallthru
          _
        %p271 = pneg %p52
        %p272 = pneg %p49
        %p273 = pneg %p73
        %p274 = pneg %p70
        %p275 = pneg %p94
        %p276 = pneg %p91
        %s277 = sand.u32 %s19, 1
        %s278 = scalar_lea.sflag [#allocation4], %s277
        %s279 = sand.u32 %s107, 1
        %s280 = smul.addr %s279, 64
        %s281 = scalar_lea.vmem [#allocation8], %s280
        %p282 = pneg %p120
        %p283 = pneg %p117
        %p284 = scmp.lt.s32.totalorder %s24, 2
        %s285 = scalar_select %p284, %s24, 2
        %s286 = scalar_lea.vmem %s4, %s285
        %p287 = pneg %p146
        %p288 = pneg %p143
        %p289 = pneg %p172
        %p290 = pneg %p169
        %p291 = scmp.lt.s32.totalorder %s24, 2
        %s292 = scalar_select %p291, %s24, 2
        %s293 = scalar_lea.vmem %s4, %s292
        %p295 = scmp.eq.s32.totalorder %s24, 0
        // Predicated region
        $region53: #{tpu_custom_call.1} parent=39 // pred_check
          %p296 = pneg %p295
        $region54: #{tpu_custom_call.1} parent=39 // pred_check_branch
          %298 = sbr.rel (%p296) target = $region56
        $region55: #{tpu_custom_call.1} parent=39 // pred_region
          %v299 = vld [vmem:[#allocation3] sm:$0xf]
          %v300 = vld [vmem:[#allocation6] sm:$0xf]
          %v301 = vld [vmem:[#allocation6 + $0x4] sm:$0xf]
          %v302 = vld [vmem:[#allocation6 + $0x8] sm:$0xf]
          %v303 = vld [vmem:[#allocation6 + $0xc] sm:$0xf]
          %v304 = vld [vmem:[#allocation6 + $0x10] sm:$0xf]
          %v305 = vld [vmem:[#allocation6 + $0x14] sm:$0xf]
          %v306 = vld [vmem:[#allocation6 + $0x18] sm:$0xf]
          %v307 = vld [vmem:[#allocation6 + $0x1c] sm:$0xf]
          %v308 = vld [vmem:[#allocation6 + $0x20] sm:$0xf]
          %v309 = vld [vmem:[#allocation6 + $0x24] sm:$0xf]
          %v310 = vld [vmem:[#allocation6 + $0x28] sm:$0xf]
          %v311 = vld [vmem:[#allocation6 + $0x2c] sm:$0xf]
          %v312 = vld [vmem:[#allocation6 + $0x30] sm:$0xf]
          %v313 = vld [vmem:[#allocation6 + $0x34] sm:$0xf]
          %v314 = vld [vmem:[#allocation6 + $0x38] sm:$0xf]
          %v315 = vld [vmem:[#allocation6 + $0x3c] sm:$0xf]
          %v316 = vld [vmem:[%s2] sm:$0x1]
          %v318 = vlaneseq
          %v319 = vshrl.u32 %v318, 7
          %v320 = vsub.s32 0, %v319
          %v321 = vrot.slane %v316, %v320
          %v339 = vunpack.c.l.b16 %v300
          %v340 = vunpack.c.l.b16 %v301
          %v341 = vunpack.c.l.b16 %v302
          %v342 = vunpack.c.l.b16 %v303
          %v343 = vunpack.c.l.b16 %v304
          %v344 = vunpack.c.l.b16 %v305
          %v345 = vunpack.c.l.b16 %v306
          %v346 = vunpack.c.l.b16 %v307
          %v347 = vunpack.c.l.b16 %v308
          %v348 = vunpack.c.l.b16 %v309
          %v349 = vunpack.c.l.b16 %v310
          %v350 = vunpack.c.l.b16 %v311
          %v351 = vunpack.c.l.b16 %v312
          %v352 = vunpack.c.l.b16 %v313
          %v353 = vunpack.c.l.b16 %v314
          %v354 = vunpack.c.l.b16 %v315
          %v355 = vpack.c.b16 %v340, %v339
          %v356 = vpack.c.b16 %v342, %v341
          %v357 = vpack.c.b16 %v344, %v343
          %v358 = vpack.c.b16 %v346, %v345
          %v359 = vpack.c.b16 %v348, %v347
          %v360 = vpack.c.b16 %v350, %v349
          %v361 = vpack.c.b16 %v352, %v351
          %v362 = vpack.c.b16 %v354, %v353
          %371 = vmatprep.subr.bf16.mxu0 0
          %372 = vmatpush1.bf16.msra.mxu0 %v355
          %373 = vmatprep.subr.bf16.mxu0 0
          %374 = vmatpush1.bf16.msra.mxu0 %v356
          %375 = vmatprep.subr.bf16.mxu0 0
          %376 = vmatpush1.bf16.msra.mxu0 %v357
          %377 = vmatprep.subr.bf16.mxu0 0
          %378 = vmatpush1.bf16.msra.mxu0 %v358
          %379 = vmatprep.subr.bf16.mxu0 0
          %380 = vmatpush1.bf16.msra.mxu0 %v359
          %381 = vmatprep.subr.bf16.mxu0 0
          %382 = vmatpush1.bf16.msra.mxu0 %v360
          %383 = vmatprep.subr.bf16.mxu0 0
          %384 = vmatpush1.bf16.msra.mxu0 %v361
          %385 = vmatprep.subr.bf16.mxu0 0
          %386 = vmatpush1.bf16.msra.mxu0 %v362
          %387 = vmatprep.subr.bf16.mxu0 0
          %388 = vmatpush1.bf16.msra.mxu0 0
          %389 = vmatprep.subr.bf16.mxu0 0
          %390 = vmatpush1.bf16.msra.mxu0 0
          %391 = vmatprep.subr.bf16.mxu0 0
          %392 = vmatpush1.bf16.msra.mxu0 0
          %393 = vmatprep.subr.bf16.mxu0 0
          %394 = vmatpush1.bf16.msra.mxu0 0
          %395 = vmatprep.subr.bf16.mxu0 0
          %396 = vmatpush1.bf16.msra.mxu0 0
          %397 = vmatprep.subr.bf16.mxu0 0
          %398 = vmatpush1.bf16.msra.mxu0 0
          %399 = vmatprep.subr.bf16.mxu0 0
          %400 = vmatpush1.bf16.msra.mxu0 0
          %401 = vmatprep.subr.bf16.mxu0 0
          %402 = vmatpush1.bf16.msra.mxu0 0
          %403 = vmatprep.mubr.bf16.mxu0 0
          %404 = vmatmul.mubr.bf16.gmra.mrb[0].mxu0 %v299
          %v405 = vpop.f32.mrb[0].mxu0
          %v406 = vadd.f32 %v321, %v405
          %v407 = vpop.f32.mrb[0].mxu0
          %v408 = vpop.f32.mrb[0].mxu0
          %v409 = vpop.f32.mrb[0].mxu0
          %410 = vdwg.mxu0
          %411 = vst [vmem:[#allocation2] sm:$0xff] %v406
        $region56: #{tpu_custom_call.1} parent=39 // pred_fallthru
          _
        %v412 = vld [vmem:[#allocation2] sm:$0xff]
        %v413 = vxor.u32 %v412, 2147483648
        %v414 = vmul.f32 %v413, 1.442695
        %v415 = vpow.pop %v414
        %v416 = vadd.f32 %v415, 1.0
        %v417 = vrcp.pop %v416
        %v418 = vmul.f32 1.0, %v417
        %v419 = vmul.f32 %v412, %v418
        %v420 = vpack.c.bf16 %v419, %v419
        %v421 = vld [vmem:[%s266] sm:$0xf]
        %v422 = vld [vmem:[%s266 + $0x4] sm:$0xf]
        %v423 = vld [vmem:[%s266 + $0x8] sm:$0xf]
        %v424 = vld [vmem:[%s266 + $0xc] sm:$0xf]
        %v425 = vld [vmem:[%s266 + $0x10] sm:$0xf]
        %v426 = vld [vmem:[%s266 + $0x14] sm:$0xf]
        %v427 = vld [vmem:[%s266 + $0x18] sm:$0xf]
        %v428 = vld [vmem:[%s266 + $0x1c] sm:$0xf]
        %v429 = vld [vmem:[%s266 + $0x20] sm:$0xf]
        %v430 = vld [vmem:[%s266 + $0x24] sm:$0xf]
        %v431 = vld [vmem:[%s266 + $0x28] sm:$0xf]
        %v432 = vld [vmem:[%s266 + $0x2c] sm:$0xf]
        %v433 = vld [vmem:[%s266 + $0x30] sm:$0xf]
        %v434 = vld [vmem:[%s266 + $0x34] sm:$0xf]
        %v435 = vld [vmem:[%s266 + $0x38] sm:$0xf]
        %v436 = vld [vmem:[%s266 + $0x3c] sm:$0xf]
        %v437 = vld [vmem:[%s293] sm:$0x1]
        %v439 = vlaneseq
        %v440 = vshrl.u32 %v439, 7
        %v441 = vsub.s32 0, %v440
        %v442 = vrot.slane %v437, %v441
        %v460 = vunpack.c.l.b16 %v421
        %v461 = vunpack.c.l.b16 %v422
        %v462 = vunpack.c.l.b16 %v423
        %v463 = vunpack.c.l.b16 %v424
        %v464 = vunpack.c.l.b16 %v425
        %v465 = vunpack.c.l.b16 %v426
        %v466 = vunpack.c.l.b16 %v427
        %v467 = vunpack.c.l.b16 %v428
        %v468 = vunpack.c.l.b16 %v429
        %v469 = vunpack.c.l.b16 %v430
        %v470 = vunpack.c.l.b16 %v431
        %v471 = vunpack.c.l.b16 %v432
        %v472 = vunpack.c.l.b16 %v433
        %v473 = vunpack.c.l.b16 %v434
        %v474 = vunpack.c.l.b16 %v435
        %v475 = vunpack.c.l.b16 %v436
        %v476 = vpack.c.b16 %v461, %v460
        %v477 = vpack.c.b16 %v463, %v462
        %v478 = vpack.c.b16 %v465, %v464
        %v479 = vpack.c.b16 %v467, %v466
        %v480 = vpack.c.b16 %v469, %v468
        %v481 = vpack.c.b16 %v471, %v470
        %v482 = vpack.c.b16 %v473, %v472
        %v483 = vpack.c.b16 %v475, %v474
        %492 = vmatprep.subr.bf16.mxu0 0
        %493 = vmatpush1.bf16.msra.mxu0 %v476
        %494 = vmatprep.subr.bf16.mxu0 0
        %495 = vmatpush1.bf16.msra.mxu0 %v477
        %496 = vmatprep.subr.bf16.mxu0 0
        %497 = vmatpush1.bf16.msra.mxu0 %v478
        %498 = vmatprep.subr.bf16.mxu0 0
        %499 = vmatpush1.bf16.msra.mxu0 %v479
        %500 = vmatprep.subr.bf16.mxu0 0
        %501 = vmatpush1.bf16.msra.mxu0 %v480
        %502 = vmatprep.subr.bf16.mxu0 0
        %503 = vmatpush1.bf16.msra.mxu0 %v481
        %504 = vmatprep.subr.bf16.mxu0 0
        %505 = vmatpush1.bf16.msra.mxu0 %v482
        %506 = vmatprep.subr.bf16.mxu0 0
        %507 = vmatpush1.bf16.msra.mxu0 %v483
        %508 = vmatprep.subr.bf16.mxu0 0
        %509 = vmatpush1.bf16.msra.mxu0 0
        %510 = vmatprep.subr.bf16.mxu0 0
        %511 = vmatpush1.bf16.msra.mxu0 0
        %512 = vmatprep.subr.bf16.mxu0 0
        %513 = vmatpush1.bf16.msra.mxu0 0
        %514 = vmatprep.subr.bf16.mxu0 0
        %515 = vmatpush1.bf16.msra.mxu0 0
        %516 = vmatprep.subr.bf16.mxu0 0
        %517 = vmatpush1.bf16.msra.mxu0 0
        %518 = vmatprep.subr.bf16.mxu0 0
        %519 = vmatpush1.bf16.msra.mxu0 0
        %520 = vmatprep.subr.bf16.mxu0 0
        %521 = vmatpush1.bf16.msra.mxu0 0
        %522 = vmatprep.subr.bf16.mxu0 0
        %523 = vmatpush1.bf16.msra.mxu0 0
        %524 = vmatprep.mubr.bf16.mxu0 0
        %525 = vmatmul.mubr.bf16.gmra.mrb[0].mxu0 %v420
        %v526 = vpop.f32.mrb[0].mxu0
        %v527 = vadd.f32 %v442, %v526
        %v528 = vpop.f32.mrb[0].mxu0
        %v529 = vpop.f32.mrb[0].mxu0
        %v530 = vpop.f32.mrb[0].mxu0
        %531 = vdwg.mxu0
        %532 = vst [vmem:[#allocation2] sm:$0xff] %v527
        %p533 = scmp.eq.s32.totalorder %s24, 2
        // Predicated region
        $region57: #{tpu_custom_call.1} parent=39 // pred_check
          %p534 = pneg %p533
        $region58: #{tpu_custom_call.1} parent=39 // pred_check_branch
          %536 = sbr.rel (%p534) target = $region60
        $region59: #{tpu_custom_call.1} parent=39 // pred_region
          %537 = vst [vmem:[#allocation9] sm:$0xff] %v527
        $region60: #{tpu_custom_call.1} parent=39 // pred_fallthru
          _
        // Predicated region
        $region61: #{tpu_custom_call.1} parent=39 // pred_check
          %p538 = pneg %p169
        $region62: #{tpu_custom_call.1} parent=39 // pred_check_branch
          %540 = sbr.rel (%p538) target = $region64
        $region63: #{tpu_custom_call.1} parent=39 // pred_region
          %s542 = ssub.s32 128, 128
          %543 = vsyncadd [#allocation5], %s542
          %s544 = smul.addr %s23, 128
          %s545 = scalar_lea.hbm %s5, %s544
          %s547 = sshll.u32 [#allocation9], 4
          %s548 = int_to_ptr.vmem [resolvable:$true] %s547
          %550 = dma.vmem_to_hbm [thread:$0]  %s548, 128, %s545, [#allocation5]
        $region64: #{tpu_custom_call.1} parent=39 // pred_fallthru
          _
        // Predicated region
        $region65: #{tpu_custom_call.1} parent=39 // pred_check
          %p551 = pneg %p169
        $region66: #{tpu_custom_call.1} parent=39 // pred_check_branch
          %553 = sbr.rel (%p551) target = $region68
        $region67: #{tpu_custom_call.1} parent=39 // pred_region
          %554 = dma.done [#allocation5], 128
        $region68: #{tpu_custom_call.1} parent=39 // pred_fallthru
          _
      $region40: #{tpu_custom_call.1} parent=5 // pred_fallthru
        _
      %p555 = scmp.le.s32.totalorder 2, %s14
      // Predicated region
      $region69: #{tpu_custom_call.1} parent=5 // pred_check
        %p556 = pneg %p555
      $region70: #{tpu_custom_call.1} parent=5 // pred_check_branch
        %558 = sbr.rel (%p556) target = $region72
      $region71: #{tpu_custom_call.1} parent=5 // pred_region
        %s559 = ssub.s32 %s14, 2
      $region72: #{tpu_custom_call.1} parent=5 // pred_fallthru
        _
    $region6: #{tpu_custom_call.1} parent=1 // loop_footer
      %s18 = sadd.s32 1, %s14
    $region7: #{tpu_custom_call.1} parent=1 // loop_footer_branch
      %13 = sbr.rel target = $region3
    $region8: #{tpu_custom_call.1} parent=1 // loop_exit
      _
    %560 = vsyncpa [#allocation4], 1
    %s561 = scalar_lea.sflag [#allocation4], 1
    %562 = vsyncpa %s561, 1
    %563 = vsyncpa [#allocation7], 1
    %564 = vsyncpa [#allocation5], 1
    %s565 = scalar_lea.sflag [#allocation5], 1
    %566 = vsyncpa %s565, 1

</llo_original>
